<compile_context>
chip_gen: v7x
topology: tpu7x:2x2x1
jax: 0.10.0
libtpu: 0.0.40
codegen_flags: <defaults>
</compile_context>

<pallas_src>
import functools

import jax
import jax.numpy as jnp
from jax.experimental import pallas as pl
from jax.experimental.pallas import tpu as pltpu

BN_EPS = 1e-5
NEG_PAD = -1e9            # logit value for padded output lanes -> softmax weight == 0
LANE = 128                # every layer padded to one full lane width
MXU_DTYPE = jnp.bfloat16  # MXU-native operand dtype on v5e/v6e/v7x


def _bn_relu_train(h, gamma, beta):
    """Training-mode BatchNorm1d (batch mean, biased variance) fused with ReLU.

    One-pass stats (E[x^2] - E[x]^2), folded into a per-feature scale/shift so the
    per-element epilogue is a single FMA followed by the ReLU max.  Padded lanes
    (h == 0, gamma == 0, beta == 0) stay exactly 0.
    """
    inv_n = 1.0 / h.shape[0]
    mean = jnp.sum(h, axis=0, keepdims=True) * inv_n
    mean_sq = jnp.sum(h * h, axis=0, keepdims=True) * inv_n
    var = jnp.maximum(mean_sq - mean * mean, 0.0)   # guard one-pass cancellation
    scale = gamma * jax.lax.rsqrt(var + BN_EPS)     # (1, LANE)
    shift = beta - mean * scale                     # (1, LANE)
    return jnp.maximum(h * scale + shift, 0.0)


def better_nn_kernel(x_ref, w_ref, p_ref, out_ref):
    in_dim = x_ref.shape[1]

    # Static Ref slices (compile-time views, sublane-aligned for bf16 (16,128) tiling).
    w1 = w_ref[0 * LANE:0 * LANE + in_dim, :]   # (in_dim, 128) bf16
    w2 = w_ref[1 * LANE:2 * LANE, :]            # (128, 128)   bf16
    w3 = w_ref[2 * LANE:3 * LANE, :]            # (128, 128)   bf16
    w4 = w_ref[3 * LANE:4 * LANE, :]            # (128, 128)   bf16

    # Packed small-param table rows: [b1,g1,be1, b2,g2,be2, b3,g3,be3, b4].
    b1, g1, be1 = p_ref[0:1, :], p_ref[1:2, :], p_ref[2:3, :]
    b2, g2, be2 = p_ref[3:4, :], p_ref[4:5, :], p_ref[5:6, :]
    b3, g3, be3 = p_ref[6:7, :], p_ref[7:8, :], p_ref[8:9, :]
    b4 = p_ref[9:10, :]                         # padded lanes hold NEG_PAD

    xb = x_ref[...].astype(MXU_DTYPE)

    # fc1 -> bn1 -> relu      (dropout == identity in eval)
    h = jnp.dot(xb, w1, preferred_element_type=jnp.float32) + b1
    h = _bn_relu_train(h, g1, be1)
    # fc2 -> bn2 -> relu
    h = jnp.dot(h.astype(MXU_DTYPE), w2, preferred_element_type=jnp.float32) + b2
    h = _bn_relu_train(h, g2, be2)
    # fc3 -> bn3 -> relu
    h = jnp.dot(h.astype(MXU_DTYPE), w3, preferred_element_type=jnp.float32) + b3
    h = _bn_relu_train(h, g3, be3)
    # fc4 -> softmax(dim=1); padded output lanes get logit NEG_PAD -> weight exactly 0
    logits = jnp.dot(h.astype(MXU_DTYPE), w4, preferred_element_type=jnp.float32) + b4

    m = jnp.max(logits, axis=1, keepdims=True)
    e = jnp.exp(logits - m)
    inv = pl.reciprocal(jnp.sum(e, axis=1, keepdims=True), approx=True)  # EUP slot
    out_ref[...] = e * inv


# ---------------------------------------------------------------------------
# One-time parameter packing (hoisted out of the per-call wrapper).
# ---------------------------------------------------------------------------

def prepare_params(params, bn):
    """Pack all model parameters ONCE into the two kernel operands.

    Returns:
      wslab: (4*LANE, LANE) bf16 — w1 @ rows 0:128, w2 @ 128:256, w3 @ 256:384,
             w4 @ 384:512; each zero-padded to (128, 128).
      ptab:  (10, LANE) f32 — rows [b1,g1,be1, b2,g2,be2, b3,g3,be3, b4]; zeros on
             padded lanes except b4, which holds NEG_PAD on padded output lanes.
    """
    (w1, b1), (w2, b2), (w3, b3), (w4, b4) = params
    (g1, be1), (g2, be2), (g3, be3) = bn
    in_dim, out_dim = w1.shape[0], w4.shape[1]
    for w in (w1, w2, w3, w4):
        assert w.shape[0] <= LANE and w.shape[1] <= LANE, "packing assumes dims <= 128"

    def wblock(w):
        blk = jnp.zeros((LANE, LANE), jnp.float32)
        return blk.at[:w.shape[0], :w.shape[1]].set(w.astype(jnp.float32))

    wslab = jnp.concatenate(
        [wblock(w1), wblock(w2), wblock(w3), wblock(w4)], axis=0
    ).astype(MXU_DTYPE)

    def prow(v, fill=0.0):
        v = v.reshape(-1).astype(jnp.float32)
        return jnp.pad(v, (0, LANE - v.shape[0]), constant_values=fill)

    ptab = jnp.stack([
        prow(b1), prow(g1), prow(be1),
        prow(b2), prow(g2), prow(be2),
        prow(b3), prow(g3), prow(be3),
        prow(b4, fill=NEG_PAD),
    ])
    return wslab, ptab, in_dim, out_dim


@functools.partial(jax.jit, static_argnums=(3,))
def better_nn_forward(x, wslab, ptab, out_dim):
    """Per-call wrapper: single pallas_call (grid=()) + output-slab slice."""
    n = x.shape[0]
    vmem = pl.BlockSpec(memory_space=pltpu.MemorySpace.VMEM)
    out = pl.pallas_call(
        better_nn_kernel,
        out_shape=jax.ShapeDtypeStruct((n, LANE), jnp.float32),
        in_specs=[vmem, vmem, vmem],
        out_specs=vmem,
    )(x, wslab, ptab)
    return out[:, :out_dim]


# ---------------------------------------------------------------------------
# Pure-JAX references for correctness checks.
# ---------------------------------------------------------------------------

def reference_matched(x, params, bn):
    """Mirror of the kernel math (bf16 matmul operands, f32 accumulation, one-pass BN,
    folded scale/shift), with an exact-reciprocal softmax."""
    (w1, b1), (w2, b2), (w3, b3), (w4, b4) = params
    (g1, be1), (g2, be2), (g3, be3) = bn

    def lin(h, w, b):
        return jnp.dot(h.astype(MXU_DTYPE), w.astype(MXU_DTYPE),
                       preferred_element_type=jnp.float32) + b

    h = _bn_relu_train(lin(x, w1, b1), g1, be1)
    h = _bn_relu_train(lin(h, w2, b2), g2, be2)
    h = _bn_relu_train(lin(h, w3, b3), g3, be3)
    logits = lin(h, w4, b4)
    m = jnp.max(logits, axis=1, keepdims=True)
    e = jnp.exp(logits - m)
    return e / jnp.sum(e, axis=1, keepdims=True)


def reference_f32(x, params, bn):
    """Plain f32 PyTorch-style forward (two-pass BN variance, jax.nn.softmax)."""
    (w1, b1), (w2, b2), (w3, b3), (w4, b4) = params
    (g1, be1), (g2, be2), (g3, be3) = bn

    def bn_t(h, g, b):
        mean = jnp.mean(h, axis=0, keepdims=True)
        var = jnp.mean((h - mean) ** 2, axis=0, keepdims=True)
        return (h - mean) * jax.lax.rsqrt(var + BN_EPS) * g + b

    h = jnp.maximum(bn_t(x @ w1 + b1, g1, be1), 0.0)
    h = jnp.maximum(bn_t(h @ w2 + b2, g2, be2), 0.0)
    h = jnp.maximum(bn_t(h @ w3 + b3, g3, be3), 0.0)
    return jax.nn.softmax(h @ w4 + b4, axis=1)


def init_params(key, input_dim, hidden_dim, output_dim):
    """Deterministic PyTorch-style init: Linear W,b ~ U(-1/sqrt(fan_in), +),
    BatchNorm gamma=1, beta=0. Weights stored as (in, out); 1-D params as (1, D)."""
    dims = [(input_dim, hidden_dim),
            (hidden_dim, hidden_dim // 2),
            (hidden_dim // 2, hidden_dim // 4),
            (hidden_dim // 4, output_dim)]
    params = []
    for fan_in, fan_out in dims:
        key, kw, kb = jax.random.split(key, 3)
        bound = 1.0 / (fan_in ** 0.5)
        w = jax.random.uniform(kw, (fan_in, fan_out), jnp.float32, -bound, bound)
        b = jax.random.uniform(kb, (1, fan_out), jnp.float32, -bound, bound)
        params.append((w, b))
    bn = [(jnp.ones((1, d), jnp.float32), jnp.zeros((1, d), jnp.float32))
          for d in (hidden_dim, hidden_dim // 2, hidden_dim // 4)]
    return params, bn


if __name__ == "__main__":
    # Small shapes consistent with the module: BetterNN(input_dim=32, hidden_dim=64, output_dim=8)
    batch, input_dim, hidden_dim, output_dim = 8, 32, 64, 8

    key = jax.random.PRNGKey(0)
    key, kx, kp = jax.random.split(key, 3)
    x = jax.random.normal(kx, (batch, input_dim), jnp.float32)
    params, bn = init_params(kp, input_dim, hidden_dim, output_dim)

    # One-time parameter packing (hoisted out of the forward path).
    wslab, ptab, _, out_dim = prepare_params(params, bn)

    out = jax.block_until_ready(better_nn_forward(x, wslab, ptab, out_dim))

    assert out.shape == (batch, output_dim)
    assert bool(jnp.all(jnp.isfinite(out)))
    # Rows sum to ~1 (tolerance covers the EUP approximate reciprocal).
    assert jnp.allclose(jnp.sum(out, axis=1), 1.0, atol=5e-3)
    # Tight check against the pure-JAX mirror of the kernel math (ground truth for
    # regression tests).
    assert jnp.allclose(out, reference_matched(x, params, bn), atol=5e-3, rtol=5e-3)
    # Semantic sanity check against the plain f32 PyTorch-style forward
    # (loose: bf16 matmul operands + approximate reciprocal).
    assert jnp.allclose(out, reference_f32(x, params, bn), atol=5e-2, rtol=0)

    print("KERNEL_OK")
</pallas_src>

<mosaic_0001>
module attributes {stable_mosaic.version = 11 : i64} {
  func.func @better_nn_kernel(%arg0: memref<8x32xf32, #tpu.memory_space<vmem>>, %arg1: memref<512x128xbf16, #tpu.memory_space<vmem>>, %arg2: memref<10x128xf32, #tpu.memory_space<vmem>>, %arg3: memref<8x128xf32, #tpu.memory_space<vmem>>) attributes {dimension_semantics = [], scalar_prefetch = 0 : i64, scratch_operands = 0 : i64, tpu.core_type = #tpu.core_type<tc>} {
    %c0 = arith.constant 0 : index
    %c0_0 = arith.constant 0 : index
    %0 = vector.load %arg1[%c0, %c0_0] : memref<512x128xbf16, #tpu.memory_space<vmem>>, vector<32x128xbf16>
    %c128 = arith.constant 128 : index
    %c0_1 = arith.constant 0 : index
    %1 = vector.load %arg1[%c128, %c0_1] : memref<512x128xbf16, #tpu.memory_space<vmem>>, vector<128x128xbf16>
    %c256 = arith.constant 256 : index
    %c0_2 = arith.constant 0 : index
    %2 = vector.load %arg1[%c256, %c0_2] : memref<512x128xbf16, #tpu.memory_space<vmem>>, vector<128x128xbf16>
    %c384 = arith.constant 384 : index
    %c0_3 = arith.constant 0 : index
    %3 = vector.load %arg1[%c384, %c0_3] : memref<512x128xbf16, #tpu.memory_space<vmem>>, vector<128x128xbf16>
    %c0_4 = arith.constant 0 : index
    %c0_5 = arith.constant 0 : index
    %4 = vector.load %arg2[%c0_4, %c0_5] : memref<10x128xf32, #tpu.memory_space<vmem>>, vector<1x128xf32>
    %c1 = arith.constant 1 : index
    %c0_6 = arith.constant 0 : index
    %5 = vector.load %arg2[%c1, %c0_6] : memref<10x128xf32, #tpu.memory_space<vmem>>, vector<1x128xf32>
    %c2 = arith.constant 2 : index
    %c0_7 = arith.constant 0 : index
    %6 = vector.load %arg2[%c2, %c0_7] : memref<10x128xf32, #tpu.memory_space<vmem>>, vector<1x128xf32>
    %c3 = arith.constant 3 : index
    %c0_8 = arith.constant 0 : index
    %7 = vector.load %arg2[%c3, %c0_8] : memref<10x128xf32, #tpu.memory_space<vmem>>, vector<1x128xf32>
    %c4 = arith.constant 4 : index
    %c0_9 = arith.constant 0 : index
    %8 = vector.load %arg2[%c4, %c0_9] : memref<10x128xf32, #tpu.memory_space<vmem>>, vector<1x128xf32>
    %c5 = arith.constant 5 : index
    %c0_10 = arith.constant 0 : index
    %9 = vector.load %arg2[%c5, %c0_10] : memref<10x128xf32, #tpu.memory_space<vmem>>, vector<1x128xf32>
    %c6 = arith.constant 6 : index
    %c0_11 = arith.constant 0 : index
    %10 = vector.load %arg2[%c6, %c0_11] : memref<10x128xf32, #tpu.memory_space<vmem>>, vector<1x128xf32>
    %c7 = arith.constant 7 : index
    %c0_12 = arith.constant 0 : index
    %11 = vector.load %arg2[%c7, %c0_12] : memref<10x128xf32, #tpu.memory_space<vmem>>, vector<1x128xf32>
    %c8 = arith.constant 8 : index
    %c0_13 = arith.constant 0 : index
    %12 = vector.load %arg2[%c8, %c0_13] : memref<10x128xf32, #tpu.memory_space<vmem>>, vector<1x128xf32>
    %c9 = arith.constant 9 : index
    %c0_14 = arith.constant 0 : index
    %13 = vector.load %arg2[%c9, %c0_14] : memref<10x128xf32, #tpu.memory_space<vmem>>, vector<1x128xf32>
    %c0_15 = arith.constant 0 : index
    %c0_16 = arith.constant 0 : index
    %14 = vector.load %arg0[%c0_15, %c0_16] : memref<8x32xf32, #tpu.memory_space<vmem>>, vector<8x32xf32>
    %15 = arith.truncf %14 : vector<8x32xf32> to vector<8x32xbf16>
    %cst = arith.constant dense<0.000000e+00> : vector<8x128xf32>
    %16 = tpu.matmul %15, %0, %cst {dimension_numbers = #tpu.dot_dimension_numbers<[1], [0], [0], [1], [0, 0, 1, 1], [], []>} : vector<8x32xbf16>, vector<32x128xbf16>, vector<8x128xf32> -> vector<8x128xf32>
    %17 = vector.broadcast %4 : vector<1x128xf32> to vector<8x128xf32>
    %18 = arith.addf %16, %17 : vector<8x128xf32>
    %cst_17 = arith.constant dense<0.000000e+00> : vector<128xf32>
    %19 = vector.multi_reduction <add>, %18, %cst_17 [0] : vector<8x128xf32> to vector<128xf32>
    %20 = vector.shape_cast %19 : vector<128xf32> to vector<1x128xf32>
    %cst_18 = arith.constant 1.250000e-01 : f32
    %21 = vector.broadcast %cst_18 : f32 to vector<1x128xf32>
    %22 = arith.mulf %20, %21 : vector<1x128xf32>
    %23 = arith.mulf %18, %18 : vector<8x128xf32>
    %cst_19 = arith.constant dense<0.000000e+00> : vector<128xf32>
    %24 = vector.multi_reduction <add>, %23, %cst_19 [0] : vector<8x128xf32> to vector<128xf32>
    %25 = vector.shape_cast %24 : vector<128xf32> to vector<1x128xf32>
    %cst_20 = arith.constant 1.250000e-01 : f32
    %26 = vector.broadcast %cst_20 : f32 to vector<1x128xf32>
    %27 = arith.mulf %25, %26 : vector<1x128xf32>
    %28 = arith.mulf %22, %22 : vector<1x128xf32>
    %29 = arith.subf %27, %28 : vector<1x128xf32>
    %cst_21 = arith.constant 0.000000e+00 : f32
    %30 = vector.broadcast %cst_21 : f32 to vector<1x128xf32>
    %31 = arith.maximumf %29, %30 : vector<1x128xf32>
    %cst_22 = arith.constant 9.99999974E-6 : f32
    %32 = vector.broadcast %cst_22 : f32 to vector<1x128xf32>
    %33 = arith.addf %31, %32 : vector<1x128xf32>
    %34 = math.rsqrt %33 : vector<1x128xf32>
    %35 = arith.mulf %5, %34 : vector<1x128xf32>
    %36 = arith.mulf %22, %35 : vector<1x128xf32>
    %37 = arith.subf %6, %36 : vector<1x128xf32>
    %38 = vector.broadcast %35 : vector<1x128xf32> to vector<8x128xf32>
    %39 = arith.mulf %18, %38 : vector<8x128xf32>
    %40 = vector.broadcast %37 : vector<1x128xf32> to vector<8x128xf32>
    %41 = arith.addf %39, %40 : vector<8x128xf32>
    %cst_23 = arith.constant 0.000000e+00 : f32
    %42 = vector.broadcast %cst_23 : f32 to vector<8x128xf32>
    %43 = arith.maximumf %41, %42 : vector<8x128xf32>
    %44 = arith.truncf %43 : vector<8x128xf32> to vector<8x128xbf16>
    %cst_24 = arith.constant dense<0.000000e+00> : vector<8x128xf32>
    %45 = tpu.matmul %44, %1, %cst_24 {dimension_numbers = #tpu.dot_dimension_numbers<[1], [0], [0], [1], [0, 0, 1, 1], [], []>} : vector<8x128xbf16>, vector<128x128xbf16>, vector<8x128xf32> -> vector<8x128xf32>
    %46 = vector.broadcast %7 : vector<1x128xf32> to vector<8x128xf32>
    %47 = arith.addf %45, %46 : vector<8x128xf32>
    %cst_25 = arith.constant dense<0.000000e+00> : vector<128xf32>
    %48 = vector.multi_reduction <add>, %47, %cst_25 [0] : vector<8x128xf32> to vector<128xf32>
    %49 = vector.shape_cast %48 : vector<128xf32> to vector<1x128xf32>
    %cst_26 = arith.constant 1.250000e-01 : f32
    %50 = vector.broadcast %cst_26 : f32 to vector<1x128xf32>
    %51 = arith.mulf %49, %50 : vector<1x128xf32>
    %52 = arith.mulf %47, %47 : vector<8x128xf32>
    %cst_27 = arith.constant dense<0.000000e+00> : vector<128xf32>
    %53 = vector.multi_reduction <add>, %52, %cst_27 [0] : vector<8x128xf32> to vector<128xf32>
    %54 = vector.shape_cast %53 : vector<128xf32> to vector<1x128xf32>
    %cst_28 = arith.constant 1.250000e-01 : f32
    %55 = vector.broadcast %cst_28 : f32 to vector<1x128xf32>
    %56 = arith.mulf %54, %55 : vector<1x128xf32>
    %57 = arith.mulf %51, %51 : vector<1x128xf32>
    %58 = arith.subf %56, %57 : vector<1x128xf32>
    %cst_29 = arith.constant 0.000000e+00 : f32
    %59 = vector.broadcast %cst_29 : f32 to vector<1x128xf32>
    %60 = arith.maximumf %58, %59 : vector<1x128xf32>
    %cst_30 = arith.constant 9.99999974E-6 : f32
    %61 = vector.broadcast %cst_30 : f32 to vector<1x128xf32>
    %62 = arith.addf %60, %61 : vector<1x128xf32>
    %63 = math.rsqrt %62 : vector<1x128xf32>
    %64 = arith.mulf %8, %63 : vector<1x128xf32>
    %65 = arith.mulf %51, %64 : vector<1x128xf32>
    %66 = arith.subf %9, %65 : vector<1x128xf32>
    %67 = vector.broadcast %64 : vector<1x128xf32> to vector<8x128xf32>
    %68 = arith.mulf %47, %67 : vector<8x128xf32>
    %69 = vector.broadcast %66 : vector<1x128xf32> to vector<8x128xf32>
    %70 = arith.addf %68, %69 : vector<8x128xf32>
    %cst_31 = arith.constant 0.000000e+00 : f32
    %71 = vector.broadcast %cst_31 : f32 to vector<8x128xf32>
    %72 = arith.maximumf %70, %71 : vector<8x128xf32>
    %73 = arith.truncf %72 : vector<8x128xf32> to vector<8x128xbf16>
    %cst_32 = arith.constant dense<0.000000e+00> : vector<8x128xf32>
    %74 = tpu.matmul %73, %2, %cst_32 {dimension_numbers = #tpu.dot_dimension_numbers<[1], [0], [0], [1], [0, 0, 1, 1], [], []>} : vector<8x128xbf16>, vector<128x128xbf16>, vector<8x128xf32> -> vector<8x128xf32>
    %75 = vector.broadcast %10 : vector<1x128xf32> to vector<8x128xf32>
    %76 = arith.addf %74, %75 : vector<8x128xf32>
    %cst_33 = arith.constant dense<0.000000e+00> : vector<128xf32>
    %77 = vector.multi_reduction <add>, %76, %cst_33 [0] : vector<8x128xf32> to vector<128xf32>
    %78 = vector.shape_cast %77 : vector<128xf32> to vector<1x128xf32>
    %cst_34 = arith.constant 1.250000e-01 : f32
    %79 = vector.broadcast %cst_34 : f32 to vector<1x128xf32>
    %80 = arith.mulf %78, %79 : vector<1x128xf32>
    %81 = arith.mulf %76, %76 : vector<8x128xf32>
    %cst_35 = arith.constant dense<0.000000e+00> : vector<128xf32>
    %82 = vector.multi_reduction <add>, %81, %cst_35 [0] : vector<8x128xf32> to vector<128xf32>
    %83 = vector.shape_cast %82 : vector<128xf32> to vector<1x128xf32>
    %cst_36 = arith.constant 1.250000e-01 : f32
    %84 = vector.broadcast %cst_36 : f32 to vector<1x128xf32>
    %85 = arith.mulf %83, %84 : vector<1x128xf32>
    %86 = arith.mulf %80, %80 : vector<1x128xf32>
    %87 = arith.subf %85, %86 : vector<1x128xf32>
    %cst_37 = arith.constant 0.000000e+00 : f32
    %88 = vector.broadcast %cst_37 : f32 to vector<1x128xf32>
    %89 = arith.maximumf %87, %88 : vector<1x128xf32>
    %cst_38 = arith.constant 9.99999974E-6 : f32
    %90 = vector.broadcast %cst_38 : f32 to vector<1x128xf32>
    %91 = arith.addf %89, %90 : vector<1x128xf32>
    %92 = math.rsqrt %91 : vector<1x128xf32>
    %93 = arith.mulf %11, %92 : vector<1x128xf32>
    %94 = arith.mulf %80, %93 : vector<1x128xf32>
    %95 = arith.subf %12, %94 : vector<1x128xf32>
    %96 = vector.broadcast %93 : vector<1x128xf32> to vector<8x128xf32>
    %97 = arith.mulf %76, %96 : vector<8x128xf32>
    %98 = vector.broadcast %95 : vector<1x128xf32> to vector<8x128xf32>
    %99 = arith.addf %97, %98 : vector<8x128xf32>
    %cst_39 = arith.constant 0.000000e+00 : f32
    %100 = vector.broadcast %cst_39 : f32 to vector<8x128xf32>
    %101 = arith.maximumf %99, %100 : vector<8x128xf32>
    %102 = arith.truncf %101 : vector<8x128xf32> to vector<8x128xbf16>
    %cst_40 = arith.constant dense<0.000000e+00> : vector<8x128xf32>
    %103 = tpu.matmul %102, %3, %cst_40 {dimension_numbers = #tpu.dot_dimension_numbers<[1], [0], [0], [1], [0, 0, 1, 1], [], []>} : vector<8x128xbf16>, vector<128x128xbf16>, vector<8x128xf32> -> vector<8x128xf32>
    %104 = vector.broadcast %13 : vector<1x128xf32> to vector<8x128xf32>
    %105 = arith.addf %103, %104 : vector<8x128xf32>
    %cst_41 = arith.constant dense<0xFF800000> : vector<8xf32>
    %106 = vector.multi_reduction <maximumf>, %105, %cst_41 [1] : vector<8x128xf32> to vector<8xf32>
    %107 = vector.shape_cast %106 : vector<8xf32> to vector<8x1xf32>
    %108 = vector.broadcast %107 : vector<8x1xf32> to vector<8x128xf32>
    %109 = arith.subf %105, %108 : vector<8x128xf32>
    %110 = math.exp %109 : vector<8x128xf32>
    %cst_42 = arith.constant dense<0.000000e+00> : vector<8xf32>
    %111 = vector.multi_reduction <add>, %110, %cst_42 [1] : vector<8x128xf32> to vector<8xf32>
    %112 = vector.shape_cast %111 : vector<8xf32> to vector<8x1xf32>
    %113 = tpu.reciprocal %112 {approx = true} : vector<8x1xf32> -> vector<8x1xf32>
    %114 = vector.broadcast %113 : vector<8x1xf32> to vector<8x128xf32>
    %115 = arith.mulf %110, %114 : vector<8x128xf32>
    %c0_43 = arith.constant 0 : index
    %c0_44 = arith.constant 0 : index
    %116 = vector.load %arg3[%c0_43, %c0_44] : memref<8x128xf32, #tpu.memory_space<vmem>>, vector<8x128xf32>
    tpu.vector_store %arg3[%c0_43, %c0_44], %115 {strides = array<i32>} : memref<8x128xf32, #tpu.memory_space<vmem>>, vector<8x128xf32>,
    return
  }
}

</mosaic_0001>

<llo_original>
// kernel: better_nn_forward.1
$region0: #{better_nn_forward.1}
  #allocation0 [shape = 'u32[]', space=smem, size = 0x4, offset = 0x4, fixed_abs, tag = 'smem constant byte address 0x4 - core index']
  #allocation1 [shape = 'u32[144,128]{1,0:T(1,128)}', space=vmem, size = 0x12000, scoped, tag = 'internal scratch']
  %s0 = inlined_call_operand.hbm [shape: f32[8,32], index: 0, kind: input, shape index: {}]
  %s1 = inlined_call_operand.hbm [shape: bf16[512,128], index: 1, kind: input, shape index: {}]
  %s2 = inlined_call_operand.hbm [shape: f32[10,128], index: 2, kind: input, shape index: {}]
  %s3 = inlined_call_operand.hbm [shape: f32[8,128], index: 3, kind: output, shape index: {}]
  %s4 = sld [smem:[#allocation0]]
  $region34: #{better_nn_forward.1} parent=0
    _
  %s6 = ssub.s32 1, %s4
  %s7 = scalar_select 0, %s6, %s4
  $region1: #{better_nn_forward.1} parent=0
    #allocation2 [shape = 'u8[4096]{0}', space=vmem, size = 0x1000, scoped, tag = 'input window, operand 0, single buffered']
    #allocation3 [shape = 's32[1]{0}', space=sflag, size = 0x4, scoped, tag = 'scoped memory for better_nn_forward.1']
    #allocation4 [shape = 's32[1]{0}', space=sflag, size = 0x4, scoped, tag = 'scoped memory for better_nn_forward.1']
    #allocation5 [shape = 'u8[131072]{0}', space=vmem, size = 0x20000, scoped, tag = 'input window, operand 1, single buffered']
    #allocation6 [shape = 's32[1]{0}', space=sflag, size = 0x4, scoped, tag = 'scoped memory for better_nn_forward.1']
    #allocation7 [shape = 'u8[8192]{0}', space=vmem, size = 0x2000, scoped, tag = 'input window, operand 2, single buffered']
    #allocation8 [shape = 'u8[4096]{0}', space=vmem, size = 0x1000, scoped, tag = 'output window, operand 0, single buffered']
    %8 = vsyncpa [#allocation3], 0
    %9 = vsyncpa [#allocation6], 0
    %10 = vsyncpa [#allocation4], 0
    // Predicated region
    $region2: #{better_nn_forward.1} parent=1 // pred_check
      _
    $region3: #{better_nn_forward.1} parent=1 // pred_check_branch
      %12 = sbr.rel (0) target = $region5
    $region4: #{better_nn_forward.1} parent=1 // pred_region
      %s14 = ssub.s32 128, 128
      %15 = vsyncadd [#allocation3], %s14
      %s17 = sshll.u32 [#allocation2], 4
      %s18 = int_to_ptr.vmem [resolvable:$true] %s17
      %20 = dma.hbm_to_vmem [thread:$0]  %s0, 128, %s18, [#allocation3]
    $region5: #{better_nn_forward.1} parent=1 // pred_fallthru
      _
    // Predicated region
    $region6: #{better_nn_forward.1} parent=1 // pred_check
      _
    $region7: #{better_nn_forward.1} parent=1 // pred_check_branch
      %22 = sbr.rel (0) target = $region9
    $region8: #{better_nn_forward.1} parent=1 // pred_region
      %s24 = ssub.s32 4096, 4096
      %25 = vsyncadd [#allocation6], %s24
      %s26 = sshll.u32 [#allocation5], 4
      %s27 = int_to_ptr.vmem [resolvable:$true] %s26
      %32 = dma.hbm_to_vmem [thread:$0]  %s1, 4096, %s27, [#allocation6], 64, 64, 4
    $region9: #{better_nn_forward.1} parent=1 // pred_fallthru
      _
    // Predicated region
    $region10: #{better_nn_forward.1} parent=1 // pred_check
      _
    $region11: #{better_nn_forward.1} parent=1 // pred_check_branch
      %34 = sbr.rel (0) target = $region13
    $region12: #{better_nn_forward.1} parent=1 // pred_region
      %s36 = ssub.s32 256, 256
      %37 = vsyncadd [#allocation6], %s36
      %s38 = sshll.u32 [#allocation7], 4
      %s39 = int_to_ptr.vmem [resolvable:$true] %s38
      %44 = dma.hbm_to_vmem [thread:$0]  %s2, 256, %s39, [#allocation6], 128, 128, 8
    $region13: #{better_nn_forward.1} parent=1 // pred_fallthru
      _
    // Predicated region
    $region14: #{better_nn_forward.1} parent=1 // pred_check
      _
    $region15: #{better_nn_forward.1} parent=1 // pred_check_branch
      %46 = sbr.rel (0) target = $region17
    $region16: #{better_nn_forward.1} parent=1 // pred_region
      %47 = dma.done [#allocation3], 128
    $region17: #{better_nn_forward.1} parent=1 // pred_fallthru
      _
    // Predicated region
    $region18: #{better_nn_forward.1} parent=1 // pred_check
      _
    $region19: #{better_nn_forward.1} parent=1 // pred_check_branch
      %49 = sbr.rel (0) target = $region21
    $region20: #{better_nn_forward.1} parent=1 // pred_region
      %50 = dma.done [#allocation6], 4096
    $region21: #{better_nn_forward.1} parent=1 // pred_fallthru
      _
    // Predicated region
    $region22: #{better_nn_forward.1} parent=1 // pred_check
      _
    $region23: #{better_nn_forward.1} parent=1 // pred_check_branch
      %52 = sbr.rel (0) target = $region25
    $region24: #{better_nn_forward.1} parent=1 // pred_region
      %53 = dma.done [#allocation6], 256
    $region25: #{better_nn_forward.1} parent=1 // pred_fallthru
      _
    %v55 = vld [vmem:[#allocation5] sm:$0xf]
    %v56 = vld [vmem:[#allocation5 + $0x4] sm:$0xf]
    %v57 = vld [vmem:[#allocation5 + $0x8] sm:$0xf]
    %v58 = vld [vmem:[#allocation5 + $0xc] sm:$0xf]
    %v59 = vld [vmem:[#allocation5 + $0x40] sm:$0xf]
    %v60 = vld [vmem:[#allocation5 + $0x44] sm:$0xf]
    %v61 = vld [vmem:[#allocation5 + $0x48] sm:$0xf]
    %v62 = vld [vmem:[#allocation5 + $0x4c] sm:$0xf]
    %v63 = vld [vmem:[#allocation5 + $0x50] sm:$0xf]
    %v64 = vld [vmem:[#allocation5 + $0x54] sm:$0xf]
    %v65 = vld [vmem:[#allocation5 + $0x58] sm:$0xf]
    %v66 = vld [vmem:[#allocation5 + $0x5c] sm:$0xf]
    %v67 = vld [vmem:[#allocation5 + $0x60] sm:$0xf]
    %v68 = vld [vmem:[#allocation5 + $0x64] sm:$0xf]
    %v69 = vld [vmem:[#allocation5 + $0x68] sm:$0xf]
    %v70 = vld [vmem:[#allocation5 + $0x6c] sm:$0xf]
    %v71 = vld [vmem:[#allocation5 + $0x70] sm:$0xf]
    %v72 = vld [vmem:[#allocation5 + $0x74] sm:$0xf]
    %v73 = vld [vmem:[#allocation5 + $0x78] sm:$0xf]
    %v74 = vld [vmem:[#allocation5 + $0x7c] sm:$0xf]
    %v75 = vld [vmem:[#allocation5 + $0x80] sm:$0xf]
    %v76 = vld [vmem:[#allocation5 + $0x84] sm:$0xf]
    %v77 = vld [vmem:[#allocation5 + $0x88] sm:$0xf]
    %v78 = vld [vmem:[#allocation5 + $0x8c] sm:$0xf]
    %v79 = vld [vmem:[#allocation5 + $0x90] sm:$0xf]
    %v80 = vld [vmem:[#allocation5 + $0x94] sm:$0xf]
    %v81 = vld [vmem:[#allocation5 + $0x98] sm:$0xf]
    %v82 = vld [vmem:[#allocation5 + $0x9c] sm:$0xf]
    %v83 = vld [vmem:[#allocation5 + $0xa0] sm:$0xf]
    %v84 = vld [vmem:[#allocation5 + $0xa4] sm:$0xf]
    %v85 = vld [vmem:[#allocation5 + $0xa8] sm:$0xf]
    %v86 = vld [vmem:[#allocation5 + $0xac] sm:$0xf]
    %v87 = vld [vmem:[#allocation5 + $0xb0] sm:$0xf]
    %v88 = vld [vmem:[#allocation5 + $0xb4] sm:$0xf]
    %v89 = vld [vmem:[#allocation5 + $0xb8] sm:$0xf]
    %v90 = vld [vmem:[#allocation5 + $0xbc] sm:$0xf]
    %v91 = vld [vmem:[#allocation5 + $0xc0] sm:$0xf]
    %v92 = vld [vmem:[#allocation5 + $0xc4] sm:$0xf]
    %v93 = vld [vmem:[#allocation5 + $0xc8] sm:$0xf]
    %v94 = vld [vmem:[#allocation5 + $0xcc] sm:$0xf]
    %v95 = vld [vmem:[#allocation5 + $0xd0] sm:$0xf]
    %v96 = vld [vmem:[#allocation5 + $0xd4] sm:$0xf]
    %v97 = vld [vmem:[#allocation5 + $0xd8] sm:$0xf]
    %v98 = vld [vmem:[#allocation5 + $0xdc] sm:$0xf]
    %v99 = vld [vmem:[#allocation5 + $0xe0] sm:$0xf]
    %v100 = vld [vmem:[#allocation5 + $0xe4] sm:$0xf]
    %v101 = vld [vmem:[#allocation5 + $0xe8] sm:$0xf]
    %v102 = vld [vmem:[#allocation5 + $0xec] sm:$0xf]
    %v103 = vld [vmem:[#allocation5 + $0xf0] sm:$0xf]
    %v104 = vld [vmem:[#allocation5 + $0xf4] sm:$0xf]
    %v105 = vld [vmem:[#allocation5 + $0xf8] sm:$0xf]
    %v106 = vld [vmem:[#allocation5 + $0xfc] sm:$0xf]
    %v107 = vld [vmem:[#allocation7] sm:$0x1]
    %v108 = vld [vmem:[#allocation7 + $0x1] sm:$0x1]
    %v109 = vld [vmem:[#allocation7 + $0x2] sm:$0x1]
    %v110 = vld [vmem:[#allocation7 + $0x3] sm:$0x1]
    %v111 = vld [vmem:[#allocation7 + $0x4] sm:$0x1]
    %v112 = vld [vmem:[#allocation7 + $0x5] sm:$0x1]
    %v113 = vld [vmem:[#allocation7 + $0x6] sm:$0x1]
    %v114 = vld [vmem:[#allocation7 + $0x7] sm:$0x1]
    %v115 = vld [vmem:[#allocation7 + $0x8] sm:$0x1]
    %v116 = vld [vmem:[#allocation7 + $0x9] sm:$0x1]
    %v117 = vld [vmem:[#allocation2] sm:$0xff]
    %v118 = vpack.c.bf16 %v117, %v117
    %v119 = vlaneseq
    %v120 = vshrl.u32 %v119, 7
    %v121 = vsub.s32 0, %v120
    %v122 = vrot.slane %v107, %v121
    %v127 = vunpack.c.l.b16 %v55
    %v128 = vunpack.c.l.b16 %v56
    %v129 = vunpack.c.l.b16 %v57
    %v130 = vunpack.c.l.b16 %v58
    %v131 = vpack.c.b16 %v128, %v127
    %v132 = vpack.c.b16 %v130, %v129
    %vm135 = vcmask 261120
    %v137 = vsel %vm135, %v118, 0
    %139 = vmatprep.subr.bf16.mxu0 0
    %140 = vmatpush1.bf16.msra.mxu0 %v131
    %141 = vmatprep.subr.bf16.mxu0 0
    %142 = vmatpush1.bf16.msra.mxu0 %v132
    %143 = vmatprep.subr.bf16.mxu0 0
    %144 = vmatpush1.bf16.msra.mxu0 0
    %145 = vmatprep.subr.bf16.mxu0 0
    %146 = vmatpush1.bf16.msra.mxu0 0
    %147 = vmatprep.subr.bf16.mxu0 0
    %148 = vmatpush1.bf16.msra.mxu0 0
    %149 = vmatprep.subr.bf16.mxu0 0
    %150 = vmatpush1.bf16.msra.mxu0 0
    %151 = vmatprep.subr.bf16.mxu0 0
    %152 = vmatpush1.bf16.msra.mxu0 0
    %153 = vmatprep.subr.bf16.mxu0 0
    %154 = vmatpush1.bf16.msra.mxu0 0
    %155 = vmatprep.subr.bf16.mxu0 0
    %156 = vmatpush1.bf16.msra.mxu0 0
    %157 = vmatprep.subr.bf16.mxu0 0
    %158 = vmatpush1.bf16.msra.mxu0 0
    %159 = vmatprep.subr.bf16.mxu0 0
    %160 = vmatpush1.bf16.msra.mxu0 0
    %161 = vmatprep.subr.bf16.mxu0 0
    %162 = vmatpush1.bf16.msra.mxu0 0
    %163 = vmatprep.subr.bf16.mxu0 0
    %164 = vmatpush1.bf16.msra.mxu0 0
    %165 = vmatprep.subr.bf16.mxu0 0
    %166 = vmatpush1.bf16.msra.mxu0 0
    %167 = vmatprep.subr.bf16.mxu0 0
    %168 = vmatpush1.bf16.msra.mxu0 0
    %169 = vmatprep.subr.bf16.mxu0 0
    %170 = vmatpush1.bf16.msra.mxu0 0
    %171 = vmatprep.mubr.bf16.mxu0 0
    %172 = vmatmul.mubr.bf16.gmra.mrb[0].mxu0 %v137
    %v173 = vpop.f32.mrb[0].mxu0
    %v174 = vadd.f32 %v122, %v173
    %v175 = vpop.f32.mrb[0].mxu0
    %v176 = vpop.f32.mrb[0].mxu0
    %v177 = vpop.f32.mrb[0].mxu0
    %178 = vdwg.mxu0
    %v179 = vrot.slane %v174, 4
    %v180 = vadd.f32 %v174, %v179
    %v181 = vrot.slane %v180, 2
    %v182 = vadd.f32 %v180, %v181
    %v183 = vrot.slane %v182, 1
    %v184 = vadd.f32 %v182, %v183
    %v185 = vmul.f32 %v184, 0.125
    %v186 = vmul.f32 %v174, %v174
    %v187 = vrot.slane %v186, 4
    %v188 = vadd.f32 %v186, %v187
    %v189 = vrot.slane %v188, 2
    %v190 = vadd.f32 %v188, %v189
    %v191 = vrot.slane %v190, 1
    %v192 = vadd.f32 %v190, %v191
    %v193 = vmul.f32 %v192, 0.125
    %v194 = vmul.f32 %v185, %v185
    %v195 = vsub.f32 %v193, %v194
    %v196 = vmax.f32 %v195, 0.0
    %v197 = vadd.f32 %v196, 1e-05
    %v198 = vrsqrt.pop %v197
    %v199 = vmul.f32 %v108, %v198
    %v200 = vmul.f32 %v185, %v199
    %v201 = vsub.f32 %v109, %v200
    %v202 = vlaneseq
    %v203 = vshrl.u32 %v202, 7
    %v204 = vsub.s32 0, %v203
    %v205 = vrot.slane %v199, %v204
    %v206 = vmul.f32 %v174, %v205
    %v207 = vlaneseq
    %v208 = vshrl.u32 %v207, 7
    %v209 = vsub.s32 0, %v208
    %v210 = vrot.slane %v201, %v209
    %v211 = vadd.f32 %v206, %v210
    %v212 = vmax.f32 %v211, 0.0
    %v213 = vpack.c.bf16 %v212, %v212
    %v214 = vlaneseq
    %v215 = vshrl.u32 %v214, 7
    %v216 = vsub.s32 0, %v215
    %v217 = vrot.slane %v110, %v216
    %v234 = vunpack.c.l.b16 %v59
    %v235 = vunpack.c.l.b16 %v60
    %v236 = vunpack.c.l.b16 %v61
    %v237 = vunpack.c.l.b16 %v62
    %v238 = vunpack.c.l.b16 %v63
    %v239 = vunpack.c.l.b16 %v64
    %v240 = vunpack.c.l.b16 %v65
    %v241 = vunpack.c.l.b16 %v66
    %v242 = vunpack.c.l.b16 %v67
    %v243 = vunpack.c.l.b16 %v68
    %v244 = vunpack.c.l.b16 %v69
    %v245 = vunpack.c.l.b16 %v70
    %v246 = vunpack.c.l.b16 %v71
    %v247 = vunpack.c.l.b16 %v72
    %v248 = vunpack.c.l.b16 %v73
    %v249 = vunpack.c.l.b16 %v74
    %v250 = vpack.c.b16 %v235, %v234
    %v251 = vpack.c.b16 %v237, %v236
    %v252 = vpack.c.b16 %v239, %v238
    %v253 = vpack.c.b16 %v241, %v240
    %v254 = vpack.c.b16 %v243, %v242
    %v255 = vpack.c.b16 %v245, %v244
    %v256 = vpack.c.b16 %v247, %v246
    %v257 = vpack.c.b16 %v249, %v248
    %266 = vmatprep.subr.bf16.mxu0 0
    %267 = vmatpush1.bf16.msra.mxu0 %v250
    %268 = vmatprep.subr.bf16.mxu0 0
    %269 = vmatpush1.bf16.msra.mxu0 %v251
    %270 = vmatprep.subr.bf16.mxu0 0
    %271 = vmatpush1.bf16.msra.mxu0 %v252
    %272 = vmatprep.subr.bf16.mxu0 0
    %273 = vmatpush1.bf16.msra.mxu0 %v253
    %274 = vmatprep.subr.bf16.mxu0 0
    %275 = vmatpush1.bf16.msra.mxu0 %v254
    %276 = vmatprep.subr.bf16.mxu0 0
    %277 = vmatpush1.bf16.msra.mxu0 %v255
    %278 = vmatprep.subr.bf16.mxu0 0
    %279 = vmatpush1.bf16.msra.mxu0 %v256
    %280 = vmatprep.subr.bf16.mxu0 0
    %281 = vmatpush1.bf16.msra.mxu0 %v257
    %282 = vmatprep.subr.bf16.mxu0 0
    %283 = vmatpush1.bf16.msra.mxu0 0
    %284 = vmatprep.subr.bf16.mxu0 0
    %285 = vmatpush1.bf16.msra.mxu0 0
    %286 = vmatprep.subr.bf16.mxu0 0
    %287 = vmatpush1.bf16.msra.mxu0 0
    %288 = vmatprep.subr.bf16.mxu0 0
    %289 = vmatpush1.bf16.msra.mxu0 0
    %290 = vmatprep.subr.bf16.mxu0 0
    %291 = vmatpush1.bf16.msra.mxu0 0
    %292 = vmatprep.subr.bf16.mxu0 0
    %293 = vmatpush1.bf16.msra.mxu0 0
    %294 = vmatprep.subr.bf16.mxu0 0
    %295 = vmatpush1.bf16.msra.mxu0 0
    %296 = vmatprep.subr.bf16.mxu0 0
    %297 = vmatpush1.bf16.msra.mxu0 0
    %298 = vmatprep.mubr.bf16.mxu0 0
    %299 = vmatmul.mubr.bf16.gmra.mrb[0].mxu0 %v213
    %v300 = vpop.f32.mrb[0].mxu0
    %v301 = vadd.f32 %v217, %v300
    %v302 = vpop.f32.mrb[0].mxu0
    %v303 = vpop.f32.mrb[0].mxu0
    %v304 = vpop.f32.mrb[0].mxu0
    %305 = vdwg.mxu0
    %v306 = vrot.slane %v301, 4
    %v307 = vadd.f32 %v301, %v306
    %v308 = vrot.slane %v307, 2
    %v309 = vadd.f32 %v307, %v308
    %v310 = vrot.slane %v309, 1
    %v311 = vadd.f32 %v309, %v310
    %v312 = vmul.f32 %v311, 0.125
    %v313 = vmul.f32 %v301, %v301
    %v314 = vrot.slane %v313, 4
    %v315 = vadd.f32 %v313, %v314
    %v316 = vrot.slane %v315, 2
    %v317 = vadd.f32 %v315, %v316
    %v318 = vrot.slane %v317, 1
    %v319 = vadd.f32 %v317, %v318
    %v320 = vmul.f32 %v319, 0.125
    %v321 = vmul.f32 %v312, %v312
    %v322 = vsub.f32 %v320, %v321
    %v323 = vmax.f32 %v322, 0.0
    %v324 = vadd.f32 %v323, 1e-05
    %v325 = vrsqrt.pop %v324
    %v326 = vmul.f32 %v111, %v325
    %v327 = vmul.f32 %v312, %v326
    %v328 = vsub.f32 %v112, %v327
    %v329 = vlaneseq
    %v330 = vshrl.u32 %v329, 7
    %v331 = vsub.s32 0, %v330
    %v332 = vrot.slane %v326, %v331
    %v333 = vmul.f32 %v301, %v332
    %v334 = vlaneseq
    %v335 = vshrl.u32 %v334, 7
    %v336 = vsub.s32 0, %v335
    %v337 = vrot.slane %v328, %v336
    %v338 = vadd.f32 %v333, %v337
    %v339 = vmax.f32 %v338, 0.0
    %v340 = vpack.c.bf16 %v339, %v339
    %v341 = vlaneseq
    %v342 = vshrl.u32 %v341, 7
    %v343 = vsub.s32 0, %v342
    %v344 = vrot.slane %v113, %v343
    %v361 = vunpack.c.l.b16 %v75
    %v362 = vunpack.c.l.b16 %v76
    %v363 = vunpack.c.l.b16 %v77
    %v364 = vunpack.c.l.b16 %v78
    %v365 = vunpack.c.l.b16 %v79
    %v366 = vunpack.c.l.b16 %v80
    %v367 = vunpack.c.l.b16 %v81
    %v368 = vunpack.c.l.b16 %v82
    %v369 = vunpack.c.l.b16 %v83
    %v370 = vunpack.c.l.b16 %v84
    %v371 = vunpack.c.l.b16 %v85
    %v372 = vunpack.c.l.b16 %v86
    %v373 = vunpack.c.l.b16 %v87
    %v374 = vunpack.c.l.b16 %v88
    %v375 = vunpack.c.l.b16 %v89
    %v376 = vunpack.c.l.b16 %v90
    %v377 = vpack.c.b16 %v362, %v361
    %v378 = vpack.c.b16 %v364, %v363
    %v379 = vpack.c.b16 %v366, %v365
    %v380 = vpack.c.b16 %v368, %v367
    %v381 = vpack.c.b16 %v370, %v369
    %v382 = vpack.c.b16 %v372, %v371
    %v383 = vpack.c.b16 %v374, %v373
    %v384 = vpack.c.b16 %v376, %v375
    %393 = vmatprep.subr.bf16.mxu0 0
    %394 = vmatpush1.bf16.msra.mxu0 %v377
    %395 = vmatprep.subr.bf16.mxu0 0
    %396 = vmatpush1.bf16.msra.mxu0 %v378
    %397 = vmatprep.subr.bf16.mxu0 0
    %398 = vmatpush1.bf16.msra.mxu0 %v379
    %399 = vmatprep.subr.bf16.mxu0 0
    %400 = vmatpush1.bf16.msra.mxu0 %v380
    %401 = vmatprep.subr.bf16.mxu0 0
    %402 = vmatpush1.bf16.msra.mxu0 %v381
    %403 = vmatprep.subr.bf16.mxu0 0
    %404 = vmatpush1.bf16.msra.mxu0 %v382
    %405 = vmatprep.subr.bf16.mxu0 0
    %406 = vmatpush1.bf16.msra.mxu0 %v383
    %407 = vmatprep.subr.bf16.mxu0 0
    %408 = vmatpush1.bf16.msra.mxu0 %v384
    %409 = vmatprep.subr.bf16.mxu0 0
    %410 = vmatpush1.bf16.msra.mxu0 0
    %411 = vmatprep.subr.bf16.mxu0 0
    %412 = vmatpush1.bf16.msra.mxu0 0
    %413 = vmatprep.subr.bf16.mxu0 0
    %414 = vmatpush1.bf16.msra.mxu0 0
    %415 = vmatprep.subr.bf16.mxu0 0
    %416 = vmatpush1.bf16.msra.mxu0 0
    %417 = vmatprep.subr.bf16.mxu0 0
    %418 = vmatpush1.bf16.msra.mxu0 0
    %419 = vmatprep.subr.bf16.mxu0 0
    %420 = vmatpush1.bf16.msra.mxu0 0
    %421 = vmatprep.subr.bf16.mxu0 0
    %422 = vmatpush1.bf16.msra.mxu0 0
    %423 = vmatprep.subr.bf16.mxu0 0
    %424 = vmatpush1.bf16.msra.mxu0 0
    %425 = vmatprep.mubr.bf16.mxu0 0
    %426 = vmatmul.mubr.bf16.gmra.mrb[0].mxu0 %v340
    %v427 = vpop.f32.mrb[0].mxu0
    %v428 = vadd.f32 %v344, %v427
    %v429 = vpop.f32.mrb[0].mxu0
    %v430 = vpop.f32.mrb[0].mxu0
    %v431 = vpop.f32.mrb[0].mxu0
    %432 = vdwg.mxu0
    %v433 = vrot.slane %v428, 4
    %v434 = vadd.f32 %v428, %v433
    %v435 = vrot.slane %v434, 2
    %v436 = vadd.f32 %v434, %v435
    %v437 = vrot.slane %v436, 1
    %v438 = vadd.f32 %v436, %v437
    %v439 = vmul.f32 %v438, 0.125
    %v440 = vmul.f32 %v428, %v428
    %v441 = vrot.slane %v440, 4
    %v442 = vadd.f32 %v440, %v441
    %v443 = vrot.slane %v442, 2
    %v444 = vadd.f32 %v442, %v443
    %v445 = vrot.slane %v444, 1
    %v446 = vadd.f32 %v444, %v445
    %v447 = vmul.f32 %v446, 0.125
    %v448 = vmul.f32 %v439, %v439
    %v449 = vsub.f32 %v447, %v448
    %v450 = vmax.f32 %v449, 0.0
    %v451 = vadd.f32 %v450, 1e-05
    %v452 = vrsqrt.pop %v451
    %v453 = vmul.f32 %v114, %v452
    %v454 = vmul.f32 %v439, %v453
    %v455 = vsub.f32 %v115, %v454
    %v456 = vlaneseq
    %v457 = vshrl.u32 %v456, 7
    %v458 = vsub.s32 0, %v457
    %v459 = vrot.slane %v453, %v458
    %v460 = vmul.f32 %v428, %v459
    %v461 = vlaneseq
    %v462 = vshrl.u32 %v461, 7
    %v463 = vsub.s32 0, %v462
    %v464 = vrot.slane %v455, %v463
    %v465 = vadd.f32 %v460, %v464
    %v466 = vmax.f32 %v465, 0.0
    %v467 = vpack.c.bf16 %v466, %v466
    %v468 = vlaneseq
    %v469 = vshrl.u32 %v468, 7
    %v470 = vsub.s32 0, %v469
    %v471 = vrot.slane %v116, %v470
    %v488 = vunpack.c.l.b16 %v91
    %v489 = vunpack.c.l.b16 %v92
    %v490 = vunpack.c.l.b16 %v93
    %v491 = vunpack.c.l.b16 %v94
    %v492 = vunpack.c.l.b16 %v95
    %v493 = vunpack.c.l.b16 %v96
    %v494 = vunpack.c.l.b16 %v97
    %v495 = vunpack.c.l.b16 %v98
    %v496 = vunpack.c.l.b16 %v99
    %v497 = vunpack.c.l.b16 %v100
    %v498 = vunpack.c.l.b16 %v101
    %v499 = vunpack.c.l.b16 %v102
    %v500 = vunpack.c.l.b16 %v103
    %v501 = vunpack.c.l.b16 %v104
    %v502 = vunpack.c.l.b16 %v105
    %v503 = vunpack.c.l.b16 %v106
    %v504 = vpack.c.b16 %v489, %v488
    %v505 = vpack.c.b16 %v491, %v490
    %v506 = vpack.c.b16 %v493, %v492
    %v507 = vpack.c.b16 %v495, %v494
    %v508 = vpack.c.b16 %v497, %v496
    %v509 = vpack.c.b16 %v499, %v498
    %v510 = vpack.c.b16 %v501, %v500
    %v511 = vpack.c.b16 %v503, %v502
    %520 = vmatprep.subr.bf16.mxu0 0
    %521 = vmatpush1.bf16.msra.mxu0 %v504
    %522 = vmatprep.subr.bf16.mxu0 0
    %523 = vmatpush1.bf16.msra.mxu0 %v505
    %524 = vmatprep.subr.bf16.mxu0 0
    %525 = vmatpush1.bf16.msra.mxu0 %v506
    %526 = vmatprep.subr.bf16.mxu0 0
    %527 = vmatpush1.bf16.msra.mxu0 %v507
    %528 = vmatprep.subr.bf16.mxu0 0
    %529 = vmatpush1.bf16.msra.mxu0 %v508
    %530 = vmatprep.subr.bf16.mxu0 0
    %531 = vmatpush1.bf16.msra.mxu0 %v509
    %532 = vmatprep.subr.bf16.mxu0 0
    %533 = vmatpush1.bf16.msra.mxu0 %v510
    %534 = vmatprep.subr.bf16.mxu0 0
    %535 = vmatpush1.bf16.msra.mxu0 %v511
    %536 = vmatprep.subr.bf16.mxu0 0
    %537 = vmatpush1.bf16.msra.mxu0 0
    %538 = vmatprep.subr.bf16.mxu0 0
    %539 = vmatpush1.bf16.msra.mxu0 0
    %540 = vmatprep.subr.bf16.mxu0 0
    %541 = vmatpush1.bf16.msra.mxu0 0
    %542 = vmatprep.subr.bf16.mxu0 0
    %543 = vmatpush1.bf16.msra.mxu0 0
    %544 = vmatprep.subr.bf16.mxu0 0
    %545 = vmatpush1.bf16.msra.mxu0 0
    %546 = vmatprep.subr.bf16.mxu0 0
    %547 = vmatpush1.bf16.msra.mxu0 0
    %548 = vmatprep.subr.bf16.mxu0 0
    %549 = vmatpush1.bf16.msra.mxu0 0
    %550 = vmatprep.subr.bf16.mxu0 0
    %551 = vmatpush1.bf16.msra.mxu0 0
    %552 = vmatprep.mubr.bf16.mxu0 0
    %553 = vmatmul.mubr.bf16.gmra.mrb[0].mxu0 %v467
    %v554 = vpop.f32.mrb[0].mxu0
    %v555 = vadd.f32 %v471, %v554
    %v556 = vpop.f32.mrb[0].mxu0
    %v557 = vpop.f32.mrb[0].mxu0
    %v558 = vpop.f32.mrb[0].mxu0
    %559 = vdwg.mxu0
    %560 = vmax.xlane.f32.xlu0 %v555
    %v561 = vpop.xlane.xlu0 %560
    %v562 = vsub.f32 %v555, %v561
    %v563 = vmul.f32 %v562, 1.442695
    %v564 = vpow.pop %v563
    %565 = vadd.xlane.f32.xlu0 %v564
    %v566 = vpop.xlane.xlu0 %565
    %v567 = vrcp.pop %v566
    %v568 = vmul.f32 %v564, %v567
    %569 = vst [vmem:[#allocation8] sm:$0xff] %v568
    // Predicated region
    $region26: #{better_nn_forward.1} parent=1 // pred_check
      _
    $region27: #{better_nn_forward.1} parent=1 // pred_check_branch
      %571 = sbr.rel (0) target = $region29
    $region28: #{better_nn_forward.1} parent=1 // pred_region
      %s573 = ssub.s32 128, 128
      %574 = vsyncadd [#allocation4], %s573
      %s576 = sshll.u32 [#allocation8], 4
      %s577 = int_to_ptr.vmem [resolvable:$true] %s576
      %579 = dma.vmem_to_hbm [thread:$0]  %s577, 128, %s3, [#allocation4]
    $region29: #{better_nn_forward.1} parent=1 // pred_fallthru
      _
    // Predicated region
    $region30: #{better_nn_forward.1} parent=1 // pred_check
      _
    $region31: #{better_nn_forward.1} parent=1 // pred_check_branch
      %581 = sbr.rel (0) target = $region33
    $region32: #{better_nn_forward.1} parent=1 // pred_region
      %582 = dma.done [#allocation4], 128
    $region33: #{better_nn_forward.1} parent=1 // pred_fallthru
      _
    %583 = vsyncpa [#allocation3], 1
    %584 = vsyncpa [#allocation6], 1
    %585 = vsyncpa [#allocation4], 1

</llo_original>
